<compile_context>
chip_gen: v6e
topology: v6e:2x2x1
jax: 0.10.0
libtpu: 0.0.40
codegen_flags: <defaults>
</compile_context>

<pallas_src>
import functools

import jax
import jax.numpy as jnp
from jax.experimental import pallas as pl
from jax.experimental.pallas import tpu as pltpu

_MIB = 1024 * 1024


def _discriminator_kernel(n_hidden, x_ref, *refs):
    """refs = (w0_ref, ..., w{n_hidden-1}_ref, fc_w_ref, fc_b_ref, out_ref)."""
    w_refs = refs[:n_hidden]
    fc_w_ref = refs[n_hidden]
    fc_b_ref = refs[n_hidden + 1]      # (1,) f32 scalar in SMEM
    out_ref = refs[n_hidden + 2]

    # Hidden MLP: Linear (no bias, MXU, f32 accumulate) + LeakyReLU(0.2).
    h = x_ref[...]
    for w_ref in w_refs:
        a = jnp.dot(h.astype(w_ref.dtype), w_ref[...],
                    preferred_element_type=jnp.float32)
        h = jnp.maximum(a, 0.2 * a)     # LeakyReLU(0.2): one max + one mul

    # Final fc has a single output feature -> skip the (C_last, 1) MXU pass:
    # VPU elementwise multiply + cross-lane (XLU) reduction instead.
    w_row = fc_w_ref[...].astype(jnp.float32)             # (1, C_last)
    logits = jnp.sum(h * w_row, axis=-1, keepdims=True)   # (TB, 1)
    logits = logits + fc_b_ref[0]                         # scalar bias from SMEM

    # Sigmoid without a divide: sigmoid(x) = 0.5 * (tanh(x/2) + 1)  (tanh -> EUP).
    out_ref[...] = 0.5 * (jnp.tanh(0.5 * logits) + 1.0)


def prepare_discriminator_params(mlp_weights, fc_weight, fc_bias,
                                 dtype=jnp.float32):
    """One-time parameter preparation (call once, NOT per forward).

    mlp_weights[i]: PyTorch-layout [out, in] (Linear, bias=False).
    fc_weight: [1, channels[-1]], fc_bias: [1].

    `dtype`: jnp.float32, jnp.bfloat16 (recommended on v5e/v6e), or on v7x
    jnp.float8_e4m3fn (fp8-native MXU; validate accuracy for your model).

    Returns:
      (hidden weights transposed to [in, out] and cast to `dtype`,
       fc weight as a [1, C_last] row cast to `dtype`,
       fc bias as a (1,) float32 scalar -> placed in SMEM by the kernel).
    """
    w_ts = tuple(jnp.asarray(w).T.astype(dtype) for w in mlp_weights)
    fc_w = jnp.asarray(fc_weight).reshape(1, -1).astype(dtype)
    fc_b = jnp.asarray(fc_bias).reshape(1).astype(jnp.float32)
    return w_ts, fc_w, fc_b


def _round_up(n, m):
    return ((n + m - 1) // m) * m


def _vmem_budget_bytes():
    """Generation-aware VMEM budget: ~75% of physical per-core VMEM.
    v7x: 64 MiB -> ~48 MiB; v5e/v6e: 128 MiB -> ~96 MiB."""
    try:
        cap = int(pltpu.get_tpu_info().vmem_capacity_bytes)
    except Exception:
        cap = 64 * _MIB          # conservative fallback: assume v7x-sized VMEM
    return (cap * 3) // 4


def _choose_batch_tile(batch, c0, x_itemsize, w_itemsize, channels,
                       resident_weight_bytes, budget_bytes,
                       target_x_tile_bytes=2 * _MIB):
    """Pick the batch tile (multiple of 8 sublanes).

    Targets ~`target_x_tile_bytes` of x per grid step (per the measured
    tile-size/roofline curve), then clamps so the FULL resident footprint —
    2x x tile, 2x weights, worst-case live activations, 2x output, slack —
    fits the generation-aware VMEM budget.
    """
    # Worst-case per-row live activation bytes during one hidden layer:
    #   f32 input + its cast-to-weight-dtype copy + f32 MXU accumulator output.
    act_row = max(cin * (4 + w_itemsize) + cout * 4
                  for cin, cout in zip(channels[:-1], channels[1:]))
    per_row = 2 * c0 * x_itemsize + 2 * 4 + act_row

    fixed = 2 * resident_weight_bytes + 1 * _MIB   # dbl-buffered weights + scratch slack
    if fixed >= budget_bytes:
        raise ValueError(
            f"Resident discriminator weights (~{fixed // _MIB} MiB double-buffered) "
            f"exceed the {budget_bytes // _MIB} MiB VMEM budget; cast params to "
            "bf16/fp8 in prepare_discriminator_params() or tile the large layers "
            "over an 'arbitrary' K grid axis.")

    tb_target = max(8, _round_up(max(1, target_x_tile_bytes // (c0 * x_itemsize)), 8))
    tb_vmem = max(8, (((budget_bytes - fixed) // per_row) // 8) * 8)
    tb = min(tb_target, tb_vmem, _round_up(batch, 8))
    return max(8, tb)


def discriminator_forward(x, params, *, target_x_tile_bytes=2 * _MIB):
    """x: [..., channels[0]] (f32 or bf16 — feed bf16 end-to-end with bf16
    params to halve the dominant x DMA stream).
    params: from prepare_discriminator_params.
    Returns sigmoid probabilities of shape [..., 1] (float32)."""
    w_ts, fc_w, fc_b = params
    n_hidden = len(w_ts)
    c0 = w_ts[0].shape[0]
    channels = [c0] + [int(w.shape[1]) for w in w_ts]

    lead = x.shape[:-1]
    x2 = x.reshape(-1, c0)
    b = x2.shape[0]

    x_itemsize = jnp.dtype(x2.dtype).itemsize
    w_itemsize = jnp.dtype(w_ts[0].dtype).itemsize
    weight_bytes = sum(int(w.size) * jnp.dtype(w.dtype).itemsize for w in w_ts)
    weight_bytes += int(fc_w.size) * jnp.dtype(fc_w.dtype).itemsize

    budget = _vmem_budget_bytes()
    tb = _choose_batch_tile(b, c0, x_itemsize, w_itemsize, channels,
                            weight_bytes, budget, target_x_tile_bytes)

    b_pad = _round_up(b, tb)
    if b_pad != b:
        x2 = jnp.pad(x2, ((0, b_pad - b), (0, 0)))

    grid = (b_pad // tb,)

    # x / out: tiled over the batch grid axis (double-buffered DMA overlaps
    # compute). Weights: full-array blocks with a constant index map -> loaded
    # once and held resident in VMEM across all grid steps.
    in_specs = [pl.BlockSpec((tb, c0), lambda i: (i, 0))]
    for w in w_ts:
        in_specs.append(pl.BlockSpec(w.shape, lambda i: (0, 0)))
    in_specs.append(pl.BlockSpec(fc_w.shape, lambda i: (0, 0)))
    in_specs.append(pl.BlockSpec(memory_space=pltpu.MemorySpace.SMEM))  # fc bias

    out_spec = pl.BlockSpec((tb, 1), lambda i: (i, 0))

    kernel = functools.partial(_discriminator_kernel, n_hidden)

    out = pl.pallas_call(
        kernel,
        out_shape=jax.ShapeDtypeStruct((b_pad, 1), jnp.float32),
        grid_spec=pl.GridSpec(
            grid=grid,
            in_specs=in_specs,
            out_specs=out_spec,
        ),
        compiler_params=pltpu.CompilerParams(
            # Batch tiles are independent -> shard across both TCs on v7x.
            dimension_semantics=("parallel",),
            # Explicit, generation-aware limit instead of the scoped default
            # (which is only 16 MiB on v5e).
            vmem_limit_bytes=int(budget),
        ),
    )(x2, *w_ts, fc_w, fc_b)

    return out[:b].reshape(*lead, 1)


def _reference_forward(x, mlp_weights, fc_weight, fc_bias):
    """Pure-JAX reference mirroring the PyTorch forward."""
    h = x
    for w in mlp_weights:
        h = h @ w.T
        h = jnp.where(h > 0, h, 0.2 * h)
    return jax.nn.sigmoid(h @ fc_weight.T + fc_bias)


if __name__ == "__main__":
    # model_config.channels chosen for a small synthetic run.
    channels = [32, 64, 16]
    batch = 8

    key = jax.random.PRNGKey(0)
    keys = jax.random.split(key, len(channels) + 2)

    # Deterministic synthetic parameters (PyTorch [out, in] layout).
    mlp_weights = []
    for i in range(1, len(channels)):
        fan_in = channels[i - 1]
        w = jax.random.normal(keys[i - 1], (channels[i], fan_in), jnp.float32)
        mlp_weights.append(w / jnp.sqrt(fan_in))
    fc_weight = jax.random.normal(keys[-2], (1, channels[-1]), jnp.float32) / jnp.sqrt(
        channels[-1]
    )
    fc_bias = jnp.full((1,), 0.1, jnp.float32)

    x = jax.random.normal(keys[-1], (batch, channels[0]), jnp.float32)
    ref = _reference_forward(x, mlp_weights, fc_weight, fc_bias)

    # --- f32 path (tight check against the reference) ---------------------
    params_f32 = prepare_discriminator_params(
        mlp_weights, fc_weight, fc_bias, dtype=jnp.float32
    )
    out = jax.block_until_ready(discriminator_forward(x, params_f32))
    assert out.shape == (batch, 1), out.shape
    assert jnp.allclose(out, ref, atol=1e-5, rtol=1e-5), (out, ref)

    # --- multi-step grid + batch padding path ------------------------------
    # Tiny per-step byte target forces TB=8 -> 26 grid steps, b_pad=208>203.
    batch2 = 203
    x_big = jax.random.normal(jax.random.PRNGKey(1), (batch2, channels[0]), jnp.float32)
    ref_big = _reference_forward(x_big, mlp_weights, fc_weight, fc_bias)
    out_big = jax.block_until_ready(
        discriminator_forward(x_big, params_f32, target_x_tile_bytes=1024)
    )
    assert out_big.shape == (batch2, 1), out_big.shape
    assert jnp.allclose(out_big, ref_big, atol=1e-5, rtol=1e-5)

    # --- bf16 end-to-end path (halves the dominant x DMA stream; f32 MXU
    # accumulation keeps accuracy at bf16 level) ----------------------------
    params_bf16 = prepare_discriminator_params(
        mlp_weights, fc_weight, fc_bias, dtype=jnp.bfloat16
    )
    out_bf16 = jax.block_until_ready(
        discriminator_forward(x.astype(jnp.bfloat16), params_bf16)
    )
    assert out_bf16.shape == (batch, 1), out_bf16.shape
    assert jnp.allclose(out_bf16.astype(jnp.float32), ref, atol=5e-2), (out_bf16, ref)

    print("KERNEL_OK")
</pallas_src>

<mosaic_0001>
module attributes {stable_mosaic.version = 11 : i64} {
  func.func @_discriminator_kernel(%arg0: i32, %arg1: memref<8x32xf32, #tpu.memory_space<vmem>>, %arg2: memref<32x64xf32, #tpu.memory_space<vmem>>, %arg3: memref<64x16xf32, #tpu.memory_space<vmem>>, %arg4: memref<1x16xf32, #tpu.memory_space<vmem>>, %arg5: memref<1xf32, #tpu.memory_space<smem>>, %arg6: memref<8x1xf32, #tpu.memory_space<vmem>>) attributes {dimension_semantics = [#tpu.dimension_semantics<parallel>], iteration_bounds = array<i64: 1>, scalar_prefetch = 0 : i64, scratch_operands = 0 : i64, tpu.core_type = #tpu.core_type<tc>, window_params = [{transform_indices = @transform_0, window_bounds = array<i64: 8, 32>}, {pipeline_mode = #tpu.pipeline_mode<synchronous>, transform_indices = @transform_1, window_bounds = array<i64: 32, 64>}, {pipeline_mode = #tpu.pipeline_mode<synchronous>, transform_indices = @transform_2, window_bounds = array<i64: 64, 16>}, {pipeline_mode = #tpu.pipeline_mode<synchronous>, transform_indices = @transform_3, window_bounds = array<i64: 1, 16>}, {transform_indices = @transform_4, window_bounds = array<i64: 1>}, {transform_indices = @transform_5, window_bounds = array<i64: 8, 1>}]} {
    %c0 = arith.constant 0 : index
    %c0_0 = arith.constant 0 : index
    %0 = vector.load %arg1[%c0, %c0_0] : memref<8x32xf32, #tpu.memory_space<vmem>>, vector<8x32xf32>
    %c0_1 = arith.constant 0 : index
    %c0_2 = arith.constant 0 : index
    %1 = vector.load %arg2[%c0_1, %c0_2] : memref<32x64xf32, #tpu.memory_space<vmem>>, vector<32x64xf32>
    %cst = arith.constant dense<0.000000e+00> : vector<8x64xf32>
    %2 = tpu.matmul %0, %1, %cst {dimension_numbers = #tpu.dot_dimension_numbers<[1], [0], [0], [1], [0, 0, 1, 1], [], []>} : vector<8x32xf32>, vector<32x64xf32>, vector<8x64xf32> -> vector<8x64xf32>
    %cst_3 = arith.constant 2.000000e-01 : f32
    %3 = vector.broadcast %cst_3 : f32 to vector<8x64xf32>
    %4 = arith.mulf %3, %2 : vector<8x64xf32>
    %5 = arith.maximumf %2, %4 : vector<8x64xf32>
    %c0_4 = arith.constant 0 : index
    %c0_5 = arith.constant 0 : index
    %6 = vector.load %arg3[%c0_4, %c0_5] : memref<64x16xf32, #tpu.memory_space<vmem>>, vector<64x16xf32>
    %cst_6 = arith.constant dense<0.000000e+00> : vector<8x16xf32>
    %7 = tpu.matmul %5, %6, %cst_6 {dimension_numbers = #tpu.dot_dimension_numbers<[1], [0], [0], [1], [0, 0, 1, 1], [], []>} : vector<8x64xf32>, vector<64x16xf32>, vector<8x16xf32> -> vector<8x16xf32>
    %cst_7 = arith.constant 2.000000e-01 : f32
    %8 = vector.broadcast %cst_7 : f32 to vector<8x16xf32>
    %9 = arith.mulf %8, %7 : vector<8x16xf32>
    %10 = arith.maximumf %7, %9 : vector<8x16xf32>
    %c0_8 = arith.constant 0 : index
    %c0_9 = arith.constant 0 : index
    %11 = vector.load %arg4[%c0_8, %c0_9] : memref<1x16xf32, #tpu.memory_space<vmem>>, vector<1x16xf32>
    %12 = vector.broadcast %11 : vector<1x16xf32> to vector<8x16xf32>
    %13 = arith.mulf %10, %12 : vector<8x16xf32>
    %cst_10 = arith.constant dense<0.000000e+00> : vector<8xf32>
    %14 = vector.multi_reduction <add>, %13, %cst_10 [1] : vector<8x16xf32> to vector<8xf32>
    %15 = vector.shape_cast %14 : vector<8xf32> to vector<8x1xf32>
    %c0_11 = arith.constant 0 : index
    %16 = memref.load %arg5[%c0_11] : memref<1xf32, #tpu.memory_space<smem>>
    %17 = vector.broadcast %16 : f32 to vector<8x1xf32>
    %18 = arith.addf %15, %17 : vector<8x1xf32>
    %cst_12 = arith.constant 5.000000e-01 : f32
    %19 = vector.broadcast %cst_12 : f32 to vector<8x1xf32>
    %20 = arith.mulf %19, %18 : vector<8x1xf32>
    %21 = math.tanh %20 : vector<8x1xf32>
    %cst_13 = arith.constant 1.000000e+00 : f32
    %22 = vector.broadcast %cst_13 : f32 to vector<8x1xf32>
    %23 = arith.addf %21, %22 : vector<8x1xf32>
    %cst_14 = arith.constant 5.000000e-01 : f32
    %24 = vector.broadcast %cst_14 : f32 to vector<8x1xf32>
    %25 = arith.mulf %24, %23 : vector<8x1xf32>
    %c0_15 = arith.constant 0 : index
    %c0_16 = arith.constant 0 : index
    %26 = vector.load %arg6[%c0_15, %c0_16] : memref<8x1xf32, #tpu.memory_space<vmem>>, vector<8x1xf32>
    tpu.vector_store %arg6[%c0_15, %c0_16], %25 {strides = array<i32>} : memref<8x1xf32, #tpu.memory_space<vmem>>, vector<8x1xf32>,
    return
  }
  func.func @transform_0(%arg0: i32) -> (i32, i32) {
    %c0_i32 = arith.constant 0 : i32
    %c0_i32_0 = arith.constant 0 : i32
    return %arg0, %c0_i32 : i32, i32
  }
  func.func @transform_1(%arg0: i32) -> (i32, i32) {
    %c0_i32 = arith.constant 0 : i32
    %c0_i32_0 = arith.constant 0 : i32
    %c0_i32_1 = arith.constant 0 : i32
    return %c0_i32, %c0_i32_0 : i32, i32
  }
  func.func @transform_2(%arg0: i32) -> (i32, i32) {
    %c0_i32 = arith.constant 0 : i32
    %c0_i32_0 = arith.constant 0 : i32
    %c0_i32_1 = arith.constant 0 : i32
    return %c0_i32, %c0_i32_0 : i32, i32
  }
  func.func @transform_3(%arg0: i32) -> (i32, i32) {
    %c0_i32 = arith.constant 0 : i32
    %c0_i32_0 = arith.constant 0 : i32
    %c0_i32_1 = arith.constant 0 : i32
    return %c0_i32, %c0_i32_0 : i32, i32
  }
  func.func @transform_4(%arg0: i32) -> i32 {
    %c0_i32 = arith.constant 0 : i32
    %c0_i32_0 = arith.constant 0 : i32
    return %c0_i32 : i32
  }
  func.func @transform_5(%arg0: i32) -> (i32, i32) {
    %c0_i32 = arith.constant 0 : i32
    %c0_i32_0 = arith.constant 0 : i32
    return %arg0, %c0_i32 : i32, i32
  }
}

</mosaic_0001>

<llo_original>
// kernel: tpu_custom_call.1
$region0: #{tpu_custom_call.1}
  #allocation0 [shape = 'u32[]', space=smem, size = 0x4, offset = 0x4, fixed_abs, tag = 'smem constant byte address 0x4 - core index']
  #allocation1 [shape = 'u32[144,128]{1,0:T(1,128)}', space=vmem, size = 0x12000, scoped, tag = 'internal scratch']
  #allocation2 [shape = 'f32[1]{0:T(128)S(6)}', space=smem, size = 0x200, scoped, tag = 'scoped memory for tpu_custom_call.1']
  %s0 = inlined_call_operand.vmem [shape: f32[8,32], index: 0, kind: input, shape index: {}]
  %s1 = inlined_call_operand.vmem [shape: f32[32,64], index: 1, kind: input, shape index: {}]
  %s2 = inlined_call_operand.vmem [shape: f32[64,16], index: 2, kind: input, shape index: {}]
  %s3 = inlined_call_operand.vmem [shape: f32[1,16], index: 3, kind: input, shape index: {}]
  %s4 = inlined_call_operand.<no memory space> [shape: f32[1], index: 4, kind: input, shape index: {}]
  %s5 = inlined_call_operand.vmem [shape: f32[8,1], index: 5, kind: output, shape index: {}]
  %s6 = sld [smem:[#allocation0]]
  $region30: #{tpu_custom_call.1} parent=0
    _
  %s8 = ssub.s32 1, %s6
  %s9 = scalar_select 0, %s8, %s6
  %10 = sst [smem:[#allocation2]] %s4
  // Predicated region
  $region2: #{tpu_custom_call.1} parent=0 // pred_check
    _
  $region3: #{tpu_custom_call.1} parent=0 // pred_check_branch
    %12 = sbr.rel (0) target = $region5
  $region4: #{tpu_custom_call.1} parent=0 // pred_region
    _
  $region5: #{tpu_custom_call.1} parent=0 // pred_fallthru
    _
  // Predicated region
  $region6: #{tpu_custom_call.1} parent=0 // pred_check
    _
  $region7: #{tpu_custom_call.1} parent=0 // pred_check_branch
    %14 = sbr.rel (0) target = $region9
  $region8: #{tpu_custom_call.1} parent=0 // pred_region
    _
  $region9: #{tpu_custom_call.1} parent=0 // pred_fallthru
    _
  // Predicated region
  $region10: #{tpu_custom_call.1} parent=0 // pred_check
    _
  $region11: #{tpu_custom_call.1} parent=0 // pred_check_branch
    %16 = sbr.rel (0) target = $region13
  $region12: #{tpu_custom_call.1} parent=0 // pred_region
    _
  $region13: #{tpu_custom_call.1} parent=0 // pred_fallthru
    _
  // Predicated region
  $region14: #{tpu_custom_call.1} parent=0 // pred_check
    _
  $region15: #{tpu_custom_call.1} parent=0 // pred_check_branch
    %18 = sbr.rel (0) target = $region17
  $region16: #{tpu_custom_call.1} parent=0 // pred_region
    _
  $region17: #{tpu_custom_call.1} parent=0 // pred_fallthru
    _
  // Predicated region
  $region18: #{tpu_custom_call.1} parent=0 // pred_check
    _
  $region19: #{tpu_custom_call.1} parent=0 // pred_check_branch
    %20 = sbr.rel (0) target = $region21
  $region20: #{tpu_custom_call.1} parent=0 // pred_region
    _
  $region21: #{tpu_custom_call.1} parent=0 // pred_fallthru
    _
  %v21 = vld [vmem:[%s0] sm:$0xff]
  %v22 = vld [vmem:[%s1] sm:$0xff]
  %v23 = vld [vmem:[%s1 + $0x8] sm:$0xff]
  %v24 = vld [vmem:[%s1 + $0x10] sm:$0xff]
  %v25 = vld [vmem:[%s1 + $0x18] sm:$0xff]
  %vm26 = vcmask 261120
  %v28 = vsel %vm26, %v21, 0
  %30 = vmatprep.subr.mxu0 0.0
  %31 = vmatpush1.msra.mxu0 0.0
  %32 = vmatprep.subr.mxu0 0.0
  %33 = vmatpush1.msra.mxu0 0.0
  %34 = vmatprep.subr.mxu0 0.0
  %35 = vmatpush1.msra.mxu0 0.0
  %36 = vmatprep.subr.mxu0 0.0
  %37 = vmatpush1.msra.mxu0 0.0
  %38 = vmatprep.subr.mxu0 0.0
  %39 = vmatpush1.msra.mxu0 0.0
  %40 = vmatprep.subr.mxu0 0.0
  %41 = vmatpush1.msra.mxu0 0.0
  %42 = vmatprep.subr.mxu0 0.0
  %43 = vmatpush1.msra.mxu0 0.0
  %44 = vmatprep.subr.mxu0 0.0
  %45 = vmatpush1.msra.mxu0 0.0
  %46 = vmatprep.subr.mxu0 0.0
  %47 = vmatpush1.msra.mxu0 0.0
  %48 = vmatprep.subr.mxu0 0.0
  %49 = vmatpush1.msra.mxu0 0.0
  %50 = vmatprep.subr.mxu0 0.0
  %51 = vmatpush1.msra.mxu0 0.0
  %52 = vmatprep.subr.mxu0 0.0
  %53 = vmatpush1.msra.mxu0 0.0
  %54 = vmatprep.subr.mxu0 0.0
  %55 = vmatpush1.msra.mxu0 %v25
  %56 = vmatprep.subr.mxu0 0.0
  %57 = vmatpush1.msra.mxu0 %v24
  %58 = vmatprep.subr.mxu0 0.0
  %59 = vmatpush1.msra.mxu0 %v23
  %60 = vmatprep.subr.mxu0 0.0
  %61 = vmatpush1.msra.mxu0 %v22
  %62 = vmatprep.subr.mxu0 0.0
  %63 = vmatpush2.msra.mxu0 0.0
  %64 = vmatprep.subr.mxu0 0.0
  %65 = vmatpush2.msra.mxu0 0.0
  %66 = vmatprep.subr.mxu0 0.0
  %67 = vmatpush2.msra.mxu0 0.0
  %68 = vmatprep.subr.mxu0 0.0
  %69 = vmatpush2.msra.mxu0 0.0
  %70 = vmatprep.subr.mxu0 0.0
  %71 = vmatpush2.msra.mxu0 0.0
  %72 = vmatprep.subr.mxu0 0.0
  %73 = vmatpush2.msra.mxu0 0.0
  %74 = vmatprep.subr.mxu0 0.0
  %75 = vmatpush2.msra.mxu0 0.0
  %76 = vmatprep.subr.mxu0 0.0
  %77 = vmatpush2.msra.mxu0 0.0
  %78 = vmatprep.subr.mxu0 0.0
  %79 = vmatpush2.msra.mxu0 0.0
  %80 = vmatprep.subr.mxu0 0.0
  %81 = vmatpush2.msra.mxu0 0.0
  %82 = vmatprep.subr.mxu0 0.0
  %83 = vmatpush2.msra.mxu0 0.0
  %84 = vmatprep.subr.mxu0 0.0
  %85 = vmatpush2.msra.mxu0 0.0
  %86 = vmatprep.subr.mxu0 0.0
  %87 = vmatpush2.msra.mxu0 0.0
  %88 = vmatprep.subr.mxu0 0.0
  %89 = vmatpush2.msra.mxu0 0.0
  %90 = vmatprep.subr.mxu0 0.0
  %91 = vmatpush2.msra.mxu0 0.0
  %92 = vmatprep.subr.mxu0 0.0
  %93 = vmatpush2.msra.mxu0 0.0
  %94 = vmatprep.mubr.f32.mxu0 0.0
  %95 = vmatmul.mubr.f32.gmra.mxu0 %v28
  %v96 = vpop.f32.mrf.mxu0
  %v97 = vadd.f32 0.0, %v96
  %v98 = vpop.f32.mrf.mxu0
  %99 = vdwg.mxu0
  %v100 = vmul.f32 %v97, 0.2
  %v101 = vmax.f32 %v97, %v100
  %v102 = vld [vmem:[%s2] sm:$0xff]
  %v103 = vld [vmem:[%s2 + $0x8] sm:$0xff]
  %v104 = vld [vmem:[%s2 + $0x10] sm:$0xff]
  %v105 = vld [vmem:[%s2 + $0x18] sm:$0xff]
  %v106 = vld [vmem:[%s2 + $0x20] sm:$0xff]
  %v107 = vld [vmem:[%s2 + $0x28] sm:$0xff]
  %v108 = vld [vmem:[%s2 + $0x30] sm:$0xff]
  %v109 = vld [vmem:[%s2 + $0x38] sm:$0xff]
  %vm110 = vcmask 523264
  %v112 = vsel %vm110, %v101, 0
  %114 = vmatprep.subr.mxu0 0.0
  %115 = vmatpush1.msra.mxu0 0.0
  %116 = vmatprep.subr.mxu0 0.0
  %117 = vmatpush1.msra.mxu0 0.0
  %118 = vmatprep.subr.mxu0 0.0
  %119 = vmatpush1.msra.mxu0 0.0
  %120 = vmatprep.subr.mxu0 0.0
  %121 = vmatpush1.msra.mxu0 0.0
  %122 = vmatprep.subr.mxu0 0.0
  %123 = vmatpush1.msra.mxu0 0.0
  %124 = vmatprep.subr.mxu0 0.0
  %125 = vmatpush1.msra.mxu0 0.0
  %126 = vmatprep.subr.mxu0 0.0
  %127 = vmatpush1.msra.mxu0 0.0
  %128 = vmatprep.subr.mxu0 0.0
  %129 = vmatpush1.msra.mxu0 0.0
  %130 = vmatprep.subr.mxu0 0.0
  %131 = vmatpush1.msra.mxu0 %v109
  %132 = vmatprep.subr.mxu0 0.0
  %133 = vmatpush1.msra.mxu0 %v108
  %134 = vmatprep.subr.mxu0 0.0
  %135 = vmatpush1.msra.mxu0 %v107
  %136 = vmatprep.subr.mxu0 0.0
  %137 = vmatpush1.msra.mxu0 %v106
  %138 = vmatprep.subr.mxu0 0.0
  %139 = vmatpush1.msra.mxu0 %v105
  %140 = vmatprep.subr.mxu0 0.0
  %141 = vmatpush1.msra.mxu0 %v104
  %142 = vmatprep.subr.mxu0 0.0
  %143 = vmatpush1.msra.mxu0 %v103
  %144 = vmatprep.subr.mxu0 0.0
  %145 = vmatpush1.msra.mxu0 %v102
  %146 = vmatprep.subr.mxu0 0.0
  %147 = vmatpush2.msra.mxu0 0.0
  %148 = vmatprep.subr.mxu0 0.0
  %149 = vmatpush2.msra.mxu0 0.0
  %150 = vmatprep.subr.mxu0 0.0
  %151 = vmatpush2.msra.mxu0 0.0
  %152 = vmatprep.subr.mxu0 0.0
  %153 = vmatpush2.msra.mxu0 0.0
  %154 = vmatprep.subr.mxu0 0.0
  %155 = vmatpush2.msra.mxu0 0.0
  %156 = vmatprep.subr.mxu0 0.0
  %157 = vmatpush2.msra.mxu0 0.0
  %158 = vmatprep.subr.mxu0 0.0
  %159 = vmatpush2.msra.mxu0 0.0
  %160 = vmatprep.subr.mxu0 0.0
  %161 = vmatpush2.msra.mxu0 0.0
  %162 = vmatprep.subr.mxu0 0.0
  %163 = vmatpush2.msra.mxu0 0.0
  %164 = vmatprep.subr.mxu0 0.0
  %165 = vmatpush2.msra.mxu0 0.0
  %166 = vmatprep.subr.mxu0 0.0
  %167 = vmatpush2.msra.mxu0 0.0
  %168 = vmatprep.subr.mxu0 0.0
  %169 = vmatpush2.msra.mxu0 0.0
  %170 = vmatprep.subr.mxu0 0.0
  %171 = vmatpush2.msra.mxu0 0.0
  %172 = vmatprep.subr.mxu0 0.0
  %173 = vmatpush2.msra.mxu0 0.0
  %174 = vmatprep.subr.mxu0 0.0
  %175 = vmatpush2.msra.mxu0 0.0
  %176 = vmatprep.subr.mxu0 0.0
  %177 = vmatpush2.msra.mxu0 0.0
  %178 = vmatprep.mubr.f32.mxu0 0.0
  %179 = vmatmul.mubr.f32.gmra.mxu0 %v112
  %v180 = vpop.f32.mrf.mxu0
  %v181 = vadd.f32 0.0, %v180
  %v182 = vpop.f32.mrf.mxu0
  %183 = vdwg.mxu0
  %v184 = vmul.f32 %v181, 0.2
  %v185 = vmax.f32 %v181, %v184
  %v186 = vld [vmem:[%s3] sm:$0x1]
  %v188 = vlaneseq
  %v189 = vshrl.u32 %v188, 7
  %v190 = vsub.s32 0, %v189
  %v191 = vrot.slane %v186, %v190
  %v193 = vmul.f32 %v185, %v191
  %vm194 = vcmask 130048
  %v195 = vsel %vm194, %v193, 0.0
  %196 = vadd.xlane.f32.xlu0 %v195
  %v197 = vpop.xlane.xlu0 %196
  %s198 = sld [smem:[#allocation2]]
  %v199 = vstv %s198
  %v200 = vadd.f32 %v197, %v199
  %v201 = vmul.f32 %v200, 0.5
  %v202 = vtanh.pop %v201
  %v203 = vadd.f32 %v202, 1.0
  %v204 = vmul.f32 %v203, 0.5
  %vm205 = vcmask 7168
  %206 = vst.msk [vmem:[%s5] sm:$0xff] %vm205, %v204
  // Predicated region
  $region22: #{tpu_custom_call.1} parent=0 // pred_check
    _
  $region23: #{tpu_custom_call.1} parent=0 // pred_check_branch
    %208 = sbr.rel (0) target = $region25
  $region24: #{tpu_custom_call.1} parent=0 // pred_region
    _
  $region25: #{tpu_custom_call.1} parent=0 // pred_fallthru
    _
  // Predicated region
  $region26: #{tpu_custom_call.1} parent=0 // pred_check
    _
  $region27: #{tpu_custom_call.1} parent=0 // pred_check_branch
    %210 = sbr.rel (0) target = $region29
  $region28: #{tpu_custom_call.1} parent=0 // pred_region
    _
  $region29: #{tpu_custom_call.1} parent=0 // pred_fallthru
    _

</llo_original>
